<compile_context>
chip_gen: v7x
topology: tpu7x:2x2x1
jax: 0.10.0
libtpu: 0.0.40
codegen_flags: <defaults>
</compile_context>

<pallas_src>
import jax
import jax.numpy as jnp
from jax.experimental import pallas as pl
from jax.experimental.pallas import tpu as pltpu


def mlp_kernel(x_ref, w1_ref, b1_ref, w2_ref, b2_ref, o_ref):
    # hidden = x @ W1 + b1  — bf16 operands, f32 accumulate on the MXU.
    x_bf16 = x_ref[...].astype(jnp.bfloat16)
    h = jnp.dot(x_bf16, w1_ref[...], preferred_element_type=jnp.float32)
    h = h + b1_ref[...]                       # b1 is (1, HID) -> broadcasts
    # sigmoid kept in f32 (EUP logistic path; v5e has no bf16 VPU/EUP).
    h = jax.nn.sigmoid(h)
    # out = hidden @ W2 + b2  — W2/b2 are lane-padded to a multiple of 128.
    y = jnp.dot(h.astype(jnp.bfloat16), w2_ref[...],
                preferred_element_type=jnp.float32)
    y = y + b2_ref[...]                       # b2 is (1, OUT_PAD)
    o_ref[...] = y.astype(o_ref.dtype)


def _round_up(x, m):
    return ((x + m - 1) // m) * m


def neural_network_forward(x, w1, b1, w2, b2, *, block_b=512):
    """Pallas TPU forward pass of NeuralNetwork: Linear -> sigmoid -> Linear.

    x:  (B, IN) float32
    w1: (IN, HID), b1: (1, HID)
    w2: (HID, OUT), b2: (1, OUT)
    """
    B, IN = x.shape
    HID = w1.shape[1]
    OUT = w2.shape[1]

    # --- batch tiling: batch rows along sublanes, tile must be a multiple of 8
    TB = min(block_b, _round_up(B, 8))
    B_pad = _round_up(B, TB)
    if B_pad != B:
        x = jnp.pad(x, ((0, B_pad - B), (0, 0)))

    # --- lane-dense output: zero-pad OUT up to a multiple of 128 (>= 128).
    OUT_PAD = max(128, _round_up(OUT, 128))
    if OUT_PAD != OUT:
        w2 = jnp.pad(w2, ((0, 0), (0, OUT_PAD - OUT)))
        b2 = jnp.pad(b2, ((0, 0), (0, OUT_PAD - OUT)))

    # --- bf16 weights: halves weight HBM traffic, native MXU operand dtype.
    w1 = w1.astype(jnp.bfloat16)
    w2 = w2.astype(jnp.bfloat16)
    b1 = b1.astype(jnp.float32)
    b2 = b2.astype(jnp.float32)

    grid = (B_pad // TB,)
    out = pl.pallas_call(
        mlp_kernel,
        out_shape=jax.ShapeDtypeStruct((B_pad, OUT_PAD), x.dtype),
        grid=grid,
        in_specs=[
            pl.BlockSpec((TB, IN), lambda i: (i, 0)),        # x tile per step
            pl.BlockSpec((IN, HID), lambda i: (0, 0)),       # weights resident
            pl.BlockSpec((1, HID), lambda i: (0, 0)),
            pl.BlockSpec((HID, OUT_PAD), lambda i: (0, 0)),
            pl.BlockSpec((1, OUT_PAD), lambda i: (0, 0)),
        ],
        out_specs=pl.BlockSpec((TB, OUT_PAD), lambda i: (i, 0)),
        compiler_params=pltpu.CompilerParams(
            dimension_semantics=("parallel",)),  # v7x: split batch over 2 TCs
    )(x, w1, b1, w2, b2)

    return out[:B, :OUT]


def init_params(key, n_in, n_hid, n_out, dtype=jnp.float32):
    """Deterministic parameter init (uniform, PyTorch-Linear-style bounds)."""
    k1, k2, k3, k4 = jax.random.split(key, 4)
    bound1 = 1.0 / jnp.sqrt(n_in)
    bound2 = 1.0 / jnp.sqrt(n_hid)
    w1 = jax.random.uniform(k1, (n_in, n_hid), dtype, -bound1, bound1)
    b1 = jax.random.uniform(k2, (1, n_hid), dtype, -bound1, bound1)
    w2 = jax.random.uniform(k3, (n_hid, n_out), dtype, -bound2, bound2)
    b2 = jax.random.uniform(k4, (1, n_out), dtype, -bound2, bound2)
    return w1, b1, w2, b2


def _reference(x, w1, b1, w2, b2):
    # Pure-JAX f32 reference (same math as the PyTorch module).
    return jax.nn.sigmoid(x @ w1 + b1) @ w2 + b2


if __name__ == "__main__":
    # Small MLP consistent with the module: input=256, hidden=128, output=16.
    IN, HID, OUT = 256, 128, 16
    key = jax.random.PRNGKey(0)
    kx, kp, kx2 = jax.random.split(key, 3)
    w1, b1, w2, b2 = init_params(kp, IN, HID, OUT)

    # Case 1: batch that exercises the grid (2 steps with block_b=128).
    B = 256
    x = jax.random.normal(kx, (B, IN), dtype=jnp.float32)
    out = neural_network_forward(x, w1, b1, w2, b2, block_b=128)
    out = jax.block_until_ready(out)
    ref = _reference(x, w1, b1, w2, b2)
    assert out.shape == (B, OUT)
    # bf16 matmul operands -> relaxed tolerance vs. the f32 reference.
    assert jnp.allclose(out, ref, atol=2e-2, rtol=2e-2)

    # Case 2: small, non-multiple-of-tile batch (exercises the padding path).
    B2 = 10
    x2 = jax.random.normal(kx2, (B2, IN), dtype=jnp.float32)
    out2 = neural_network_forward(x2, w1, b1, w2, b2)
    out2 = jax.block_until_ready(out2)
    ref2 = _reference(x2, w1, b1, w2, b2)
    assert out2.shape == (B2, OUT)
    assert jnp.allclose(out2, ref2, atol=2e-2, rtol=2e-2)

    print("KERNEL_OK")
</pallas_src>

<mosaic_0001>
module attributes {stable_mosaic.version = 11 : i64} {
  func.func @mlp_kernel(%arg0: i32, %arg1: memref<128x256xf32, #tpu.memory_space<vmem>>, %arg2: memref<256x128xbf16, #tpu.memory_space<vmem>>, %arg3: memref<1x128xf32, #tpu.memory_space<vmem>>, %arg4: memref<128x128xbf16, #tpu.memory_space<vmem>>, %arg5: memref<1x128xf32, #tpu.memory_space<vmem>>, %arg6: memref<128x128xf32, #tpu.memory_space<vmem>>) attributes {dimension_semantics = [#tpu.dimension_semantics<parallel>], iteration_bounds = array<i64: 2>, scalar_prefetch = 0 : i64, scratch_operands = 0 : i64, tpu.core_type = #tpu.core_type<tc>, window_params = [{transform_indices = @transform_0, window_bounds = array<i64: 128, 256>}, {pipeline_mode = #tpu.pipeline_mode<synchronous>, transform_indices = @transform_1, window_bounds = array<i64: 256, 128>}, {pipeline_mode = #tpu.pipeline_mode<synchronous>, transform_indices = @transform_2, window_bounds = array<i64: 1, 128>}, {pipeline_mode = #tpu.pipeline_mode<synchronous>, transform_indices = @transform_3, window_bounds = array<i64: 128, 128>}, {pipeline_mode = #tpu.pipeline_mode<synchronous>, transform_indices = @transform_4, window_bounds = array<i64: 1, 128>}, {transform_indices = @transform_5, window_bounds = array<i64: 128, 128>}]} {
    %c0 = arith.constant 0 : index
    %c0_0 = arith.constant 0 : index
    %0 = vector.load %arg1[%c0, %c0_0] : memref<128x256xf32, #tpu.memory_space<vmem>>, vector<128x256xf32>
    %1 = arith.truncf %0 : vector<128x256xf32> to vector<128x256xbf16>
    %c0_1 = arith.constant 0 : index
    %c0_2 = arith.constant 0 : index
    %2 = vector.load %arg2[%c0_1, %c0_2] : memref<256x128xbf16, #tpu.memory_space<vmem>>, vector<256x128xbf16>
    %cst = arith.constant dense<0.000000e+00> : vector<128x128xf32>
    %3 = tpu.matmul %1, %2, %cst {dimension_numbers = #tpu.dot_dimension_numbers<[1], [0], [0], [1], [0, 0, 1, 1], [], []>} : vector<128x256xbf16>, vector<256x128xbf16>, vector<128x128xf32> -> vector<128x128xf32>
    %c0_3 = arith.constant 0 : index
    %c0_4 = arith.constant 0 : index
    %4 = vector.load %arg3[%c0_3, %c0_4] : memref<1x128xf32, #tpu.memory_space<vmem>>, vector<1x128xf32>
    %5 = vector.broadcast %4 : vector<1x128xf32> to vector<128x128xf32>
    %6 = arith.addf %3, %5 : vector<128x128xf32>
    %7 = arith.negf %6 : vector<128x128xf32>
    %8 = math.exp %7 : vector<128x128xf32>
    %cst_5 = arith.constant 1.000000e+00 : f32
    %9 = vector.broadcast %cst_5 : f32 to vector<128x128xf32>
    %10 = arith.addf %9, %8 : vector<128x128xf32>
    %11 = arith.divf %9, %10 : vector<128x128xf32>
    %12 = arith.truncf %11 : vector<128x128xf32> to vector<128x128xbf16>
    %c0_6 = arith.constant 0 : index
    %c0_7 = arith.constant 0 : index
    %13 = vector.load %arg4[%c0_6, %c0_7] : memref<128x128xbf16, #tpu.memory_space<vmem>>, vector<128x128xbf16>
    %cst_8 = arith.constant dense<0.000000e+00> : vector<128x128xf32>
    %14 = tpu.matmul %12, %13, %cst_8 {dimension_numbers = #tpu.dot_dimension_numbers<[1], [0], [0], [1], [0, 0, 1, 1], [], []>} : vector<128x128xbf16>, vector<128x128xbf16>, vector<128x128xf32> -> vector<128x128xf32>
    %c0_9 = arith.constant 0 : index
    %c0_10 = arith.constant 0 : index
    %15 = vector.load %arg5[%c0_9, %c0_10] : memref<1x128xf32, #tpu.memory_space<vmem>>, vector<1x128xf32>
    %16 = vector.broadcast %15 : vector<1x128xf32> to vector<128x128xf32>
    %17 = arith.addf %14, %16 : vector<128x128xf32>
    %c0_11 = arith.constant 0 : index
    %c0_12 = arith.constant 0 : index
    %18 = vector.load %arg6[%c0_11, %c0_12] : memref<128x128xf32, #tpu.memory_space<vmem>>, vector<128x128xf32>
    tpu.vector_store %arg6[%c0_11, %c0_12], %17 {strides = array<i32>} : memref<128x128xf32, #tpu.memory_space<vmem>>, vector<128x128xf32>,
    return
  }
  func.func @transform_0(%arg0: i32) -> (i32, i32) {
    %c0_i32 = arith.constant 0 : i32
    %c0_i32_0 = arith.constant 0 : i32
    return %arg0, %c0_i32 : i32, i32
  }
  func.func @transform_1(%arg0: i32) -> (i32, i32) {
    %c0_i32 = arith.constant 0 : i32
    %c0_i32_0 = arith.constant 0 : i32
    %c0_i32_1 = arith.constant 0 : i32
    return %c0_i32, %c0_i32_0 : i32, i32
  }
  func.func @transform_2(%arg0: i32) -> (i32, i32) {
    %c0_i32 = arith.constant 0 : i32
    %c0_i32_0 = arith.constant 0 : i32
    %c0_i32_1 = arith.constant 0 : i32
    return %c0_i32, %c0_i32_0 : i32, i32
  }
  func.func @transform_3(%arg0: i32) -> (i32, i32) {
    %c0_i32 = arith.constant 0 : i32
    %c0_i32_0 = arith.constant 0 : i32
    %c0_i32_1 = arith.constant 0 : i32
    return %c0_i32, %c0_i32_0 : i32, i32
  }
  func.func @transform_4(%arg0: i32) -> (i32, i32) {
    %c0_i32 = arith.constant 0 : i32
    %c0_i32_0 = arith.constant 0 : i32
    %c0_i32_1 = arith.constant 0 : i32
    return %c0_i32, %c0_i32_0 : i32, i32
  }
  func.func @transform_5(%arg0: i32) -> (i32, i32) {
    %c0_i32 = arith.constant 0 : i32
    %c0_i32_0 = arith.constant 0 : i32
    return %arg0, %c0_i32 : i32, i32
  }
}

</mosaic_0001>

<llo_original>
// kernel: tpu_custom_call.1
$region0: #{tpu_custom_call.1}
  #allocation0 [shape = 'u32[]', space=smem, size = 0x4, offset = 0x4, fixed_abs, tag = 'smem constant byte address 0x4 - core index']
  #allocation1 [shape = 'u32[144,128]{1,0:T(1,128)}', space=vmem, size = 0x12000, scoped, tag = 'internal scratch']
  %s0 = inlined_call_operand.hbm [shape: f32[256,256], index: 0, kind: input, shape index: {}]
  %s1 = inlined_call_operand.hbm [shape: bf16[256,128], index: 1, kind: input, shape index: {}]
  %s2 = inlined_call_operand.vmem [shape: f32[1,128], index: 2, kind: input, shape index: {}]
  %s3 = inlined_call_operand.hbm [shape: bf16[128,128], index: 3, kind: input, shape index: {}]
  %s4 = inlined_call_operand.vmem [shape: f32[1,128], index: 4, kind: input, shape index: {}]
  %s5 = inlined_call_operand.hbm [shape: f32[256,128], index: 5, kind: output, shape index: {}]
  %s6 = sld [smem:[#allocation0]]
  $region65: #{tpu_custom_call.1} parent=0
    _
  %s8 = ssub.s32 1, %s6
  %s9 = scalar_select 0, %s8, %s6
  $region1: #{tpu_custom_call.1} parent=0
    #allocation2 [shape = 'u8[262144]{0}', space=vmem, size = 0x40000, scoped, tag = 'input window, operand 0']
    #allocation3 [shape = 's32[2]{0}', space=sflag, size = 0x8, scoped, tag = 'scoped memory for tpu_custom_call.1']
    #allocation4 [shape = 's32[2]{0}', space=sflag, size = 0x8, scoped, tag = 'scoped memory for tpu_custom_call.1']
    #allocation5 [shape = 'u8[65536]{0}', space=vmem, size = 0x10000, scoped, tag = 'input window, operand 1, single buffered']
    #allocation6 [shape = 's32[1]{0}', space=sflag, size = 0x4, scoped, tag = 'scoped memory for tpu_custom_call.1']
    #allocation7 [shape = 'u8[32768]{0}', space=vmem, size = 0x8000, scoped, tag = 'input window, operand 3, single buffered']
    #allocation8 [shape = 'u8[131072]{0}', space=vmem, size = 0x20000, scoped, tag = 'output window, operand 0']
    %10 = vsyncpa [#allocation3], 0
    %s11 = scalar_lea.sflag [#allocation3], 1
    %12 = vsyncpa %s11, 0
    %13 = vsyncpa [#allocation6], 0
    %14 = vsyncpa [#allocation4], 0
    %s15 = scalar_lea.sflag [#allocation4], 1
    %16 = vsyncpa %s15, 0
    loop: start=0, step=1, limit=4
    $region2: #{tpu_custom_call.1} parent=1 // loop_pre_header
      _
    $region3: #{tpu_custom_call.1} parent=1 // loop_header
      %s18 = sphi 0, %s22
      %p19 = scmp.ge.s32.totalorder %s18, 4
      %s28 = sphi 0, %s30
      %s31 = sphi 0, %s28
      %s32 = sphi 0, %s31
      %s48 = sphi 0, %s32
      %s52 = sphi 0, %s52
      %s54 = sphi 0, %s52
      %s55 = sphi 0, %s54
      %s69 = sphi 0, %s55
      %s73 = sphi 0, %s73
      %s75 = sphi 0, %s73
      %s76 = sphi 0, %s75
      %s90 = sphi 0, %s76
      %s94 = sphi 0, %s94
      %s96 = sphi 0, %s94
      %s97 = sphi 0, %s96
      %s111 = sphi 0, %s97
      %s115 = sphi 0, %s115
      %s117 = sphi 0, %s115
      %s118 = sphi 0, %s117
      %s132 = sphi 0, %s118
      %s138 = sphi 0, %s140
      %s141 = sphi 0, %s138
      %s142 = sphi 0, %s141
      %s158 = sphi 0, %s142
    $region4: #{tpu_custom_call.1} parent=1 // loop_header_branch
      %21 = sbr.rel (%p19) target = $region8
    $region5: #{tpu_custom_call.1} parent=1 // loop_body
      %s23 = ssub.s32 %s18, 1
      %s24 = ssub.s32 %s18, 2
      %s25 = sadd.s32 %s18, 1
      %s26 = ssub.s32 %s18, %s25
      %p27 = scmp.eq.s32.totalorder %s26, 0
      %s29 = sadd.s32 %s28, 1
      %s30 = scalar_select %p27, %s28, %s29
      %p33 = pneg %p27
      %p34 = scmp.eq.s32.totalorder %s18, 1
      %p35 = por %p33, %p34
      %p36 = scmp.ne.s32.totalorder %s28, %s31
      %p37 = scmp.eq.s32.totalorder %s18, 0
      %p38 = por %p36, %p37
      %p39 = scmp.ne.s32.totalorder %s28, %s31
      %p40 = scmp.eq.s32.totalorder %s23, 1
      %p41 = por %p39, %p40
      %p42 = scmp.ne.s32.totalorder %s31, %s32
      %p43 = scmp.eq.s32.totalorder %s23, 0
      %p44 = por %p42, %p43
      %p45 = scmp.ne.s32.totalorder %s31, %s32
      %p46 = scmp.eq.s32.totalorder %s24, 1
      %p47 = por %p45, %p46
      %p49 = scmp.ne.s32.totalorder %s32, %s48
      %p50 = scmp.eq.s32.totalorder %s24, 0
      %p51 = por %p49, %p50
      %s53 = sadd.s32 %s52, 1
      %p56 = scmp.eq.s32.totalorder %s18, 1
      %p57 = scmp.ne.s32.totalorder %s52, %s54
      %p58 = scmp.eq.s32.totalorder %s18, 0
      %p59 = por %p57, %p58
      %p60 = scmp.ne.s32.totalorder %s52, %s54
      %p61 = scmp.eq.s32.totalorder %s23, 1
      %p62 = por %p60, %p61
      %p63 = scmp.ne.s32.totalorder %s54, %s55
      %p64 = scmp.eq.s32.totalorder %s23, 0
      %p65 = por %p63, %p64
      %p66 = scmp.ne.s32.totalorder %s54, %s55
      %p67 = scmp.eq.s32.totalorder %s24, 1
      %p68 = por %p66, %p67
      %p70 = scmp.ne.s32.totalorder %s55, %s69
      %p71 = scmp.eq.s32.totalorder %s24, 0
      %p72 = por %p70, %p71
      %s74 = sadd.s32 %s73, 1
      %p77 = scmp.eq.s32.totalorder %s18, 1
      %p78 = scmp.ne.s32.totalorder %s73, %s75
      %p79 = scmp.eq.s32.totalorder %s18, 0
      %p80 = por %p78, %p79
      %p81 = scmp.ne.s32.totalorder %s73, %s75
      %p82 = scmp.eq.s32.totalorder %s23, 1
      %p83 = por %p81, %p82
      %p84 = scmp.ne.s32.totalorder %s75, %s76
      %p85 = scmp.eq.s32.totalorder %s23, 0
      %p86 = por %p84, %p85
      %p87 = scmp.ne.s32.totalorder %s75, %s76
      %p88 = scmp.eq.s32.totalorder %s24, 1
      %p89 = por %p87, %p88
      %p91 = scmp.ne.s32.totalorder %s76, %s90
      %p92 = scmp.eq.s32.totalorder %s24, 0
      %p93 = por %p91, %p92
      %s95 = sadd.s32 %s94, 1
      %p98 = scmp.eq.s32.totalorder %s18, 1
      %p99 = scmp.ne.s32.totalorder %s94, %s96
      %p100 = scmp.eq.s32.totalorder %s18, 0
      %p101 = por %p99, %p100
      %p102 = scmp.ne.s32.totalorder %s94, %s96
      %p103 = scmp.eq.s32.totalorder %s23, 1
      %p104 = por %p102, %p103
      %p105 = scmp.ne.s32.totalorder %s96, %s97
      %p106 = scmp.eq.s32.totalorder %s23, 0
      %p107 = por %p105, %p106
      %p108 = scmp.ne.s32.totalorder %s96, %s97
      %p109 = scmp.eq.s32.totalorder %s24, 1
      %p110 = por %p108, %p109
      %p112 = scmp.ne.s32.totalorder %s97, %s111
      %p113 = scmp.eq.s32.totalorder %s24, 0
      %p114 = por %p112, %p113
      %s116 = sadd.s32 %s115, 1
      %p119 = scmp.eq.s32.totalorder %s18, 1
      %p120 = scmp.ne.s32.totalorder %s115, %s117
      %p121 = scmp.eq.s32.totalorder %s18, 0
      %p122 = por %p120, %p121
      %p123 = scmp.ne.s32.totalorder %s115, %s117
      %p124 = scmp.eq.s32.totalorder %s23, 1
      %p125 = por %p123, %p124
      %p126 = scmp.ne.s32.totalorder %s117, %s118
      %p127 = scmp.eq.s32.totalorder %s23, 0
      %p128 = por %p126, %p127
      %p129 = scmp.ne.s32.totalorder %s117, %s118
      %p130 = scmp.eq.s32.totalorder %s24, 1
      %p131 = por %p129, %p130
      %p133 = scmp.ne.s32.totalorder %s118, %s132
      %p134 = scmp.eq.s32.totalorder %s24, 0
      %p135 = por %p133, %p134
      %s136 = ssub.s32 %s18, %s25
      %p137 = scmp.eq.s32.totalorder %s136, 0
      %s139 = sadd.s32 %s138, 1
      %s140 = scalar_select %p137, %s138, %s139
      %p143 = pneg %p137
      %p144 = scmp.eq.s32.totalorder %s18, 1
      %p145 = por %p143, %p144
      %p146 = scmp.ne.s32.totalorder %s138, %s141
      %p147 = scmp.eq.s32.totalorder %s18, 0
      %p148 = por %p146, %p147
      %p149 = scmp.ne.s32.totalorder %s138, %s141
      %p150 = scmp.eq.s32.totalorder %s23, 1
      %p151 = por %p149, %p150
      %p152 = scmp.ne.s32.totalorder %s141, %s142
      %p153 = scmp.eq.s32.totalorder %s23, 0
      %p154 = por %p152, %p153
      %p155 = scmp.ne.s32.totalorder %s141, %s142
      %p156 = scmp.eq.s32.totalorder %s24, 1
      %p157 = por %p155, %p156
      %p159 = scmp.ne.s32.totalorder %s142, %s158
      %p160 = scmp.eq.s32.totalorder %s24, 0
      %p161 = por %p159, %p160
      %p162 = scmp.le.s32.totalorder 1, %s18
      %p163 = scmp.lt.s32.totalorder %s18, 3
      %p164 = pnand %p162, %p163
      %p165 = pneg %p164
      // Predicated region
      $region9: #{tpu_custom_call.1} parent=5 // pred_check
        _
      $region10: #{tpu_custom_call.1} parent=5 // pred_check_branch
        %167 = sbr.rel (%p164) target = $region12
      $region11: #{tpu_custom_call.1} parent=5 // pred_region
        %s168 = ssub.s32 %s18, 1
        // Predicated region
        $region13: #{tpu_custom_call.1} parent=11 // pred_check
          %p169 = pneg %p65
        $region14: #{tpu_custom_call.1} parent=11 // pred_check_branch
          %171 = sbr.rel (%p169) target = $region16
        $region15: #{tpu_custom_call.1} parent=11 // pred_region
          %s173 = ssub.s32 2048, 2048
          %174 = vsyncadd [#allocation6], %s173
          %s175 = sshll.u32 [#allocation5], 4
          %s176 = int_to_ptr.vmem [resolvable:$true] %s175
          %181 = dma.hbm_to_vmem [thread:$0]  %s1, 2048, %s176, [#allocation6], 64, 64, 4
        $region16: #{tpu_custom_call.1} parent=11 // pred_fallthru
          _
        // Predicated region
        $region17: #{tpu_custom_call.1} parent=11 // pred_check
          %p182 = pneg %p86
        $region18: #{tpu_custom_call.1} parent=11 // pred_check_branch
          %184 = sbr.rel (%p182) target = $region20
        $region19: #{tpu_custom_call.1} parent=11 // pred_region
          _
        $region20: #{tpu_custom_call.1} parent=11 // pred_fallthru
          _
        // Predicated region
        $region21: #{tpu_custom_call.1} parent=11 // pred_check
          %p185 = pneg %p107
        $region22: #{tpu_custom_call.1} parent=11 // pred_check_branch
          %187 = sbr.rel (%p185) target = $region24
        $region23: #{tpu_custom_call.1} parent=11 // pred_region
          %s189 = ssub.s32 1024, 1024
          %190 = vsyncadd [#allocation6], %s189
          %s191 = sshll.u32 [#allocation7], 4
          %s192 = int_to_ptr.vmem [resolvable:$true] %s191
          %197 = dma.hbm_to_vmem [thread:$0]  %s3, 1024, %s192, [#allocation6], 64, 64, 4
        $region24: #{tpu_custom_call.1} parent=11 // pred_fallthru
          _
        // Predicated region
        $region25: #{tpu_custom_call.1} parent=11 // pred_check
          %p198 = pneg %p128
        $region26: #{tpu_custom_call.1} parent=11 // pred_check_branch
          %200 = sbr.rel (%p198) target = $region28
        $region27: #{tpu_custom_call.1} parent=11 // pred_region
          _
        $region28: #{tpu_custom_call.1} parent=11 // pred_fallthru
          _
      $region12: #{tpu_custom_call.1} parent=5 // pred_fallthru
        _
      %p201 = scmp.lt.s32.totalorder %s18, 2
      // Predicated region
      $region29: #{tpu_custom_call.1} parent=5 // pred_check
        %p202 = pneg %p201
      $region30: #{tpu_custom_call.1} parent=5 // pred_check_branch
        %204 = sbr.rel (%p202) target = $region32
      $region31: #{tpu_custom_call.1} parent=5 // pred_region
        // Predicated region
        $region33: #{tpu_custom_call.1} parent=31 // pred_check
          %p205 = pneg %p38
        $region34: #{tpu_custom_call.1} parent=31 // pred_check_branch
          %207 = sbr.rel (%p205) target = $region36
        $region35: #{tpu_custom_call.1} parent=31 // pred_region
          %s208 = sand.u32 %s28, 1
          %s209 = scalar_lea.sflag [#allocation3], %s208
          %s210 = sand.u32 %s28, 1
          %s211 = smul.addr %s210, 256
          %s212 = scalar_lea.vmem [#allocation2], %s211
          %s213 = smul.u32 16, %s18
          %s215 = ssub.s32 4096, 4096
          %216 = vsyncadd %s209, %s215
          %s217 = smul.addr %s213, 2
          %s218 = smul.addr %s217, 128
          %s219 = scalar_lea.hbm %s0, %s218
          %s220 = sshll.u32 %s212, 4
          %s221 = int_to_ptr.vmem [resolvable:$true] %s220
          %226 = dma.hbm_to_vmem [thread:$0]  %s219, 4096, %s221, %s209, 256, 256, 16
        $region36: #{tpu_custom_call.1} parent=31 // pred_fallthru
          _
      $region32: #{tpu_custom_call.1} parent=5 // pred_fallthru
        _
      %p227 = scmp.le.s32.totalorder 1, %s18
      %p228 = scmp.lt.s32.totalorder %s18, 3
      %p229 = pnand %p227, %p228
      %p230 = pneg %p229
      // Predicated region
      $region37: #{tpu_custom_call.1} parent=5 // pred_check
        _
      $region38: #{tpu_custom_call.1} parent=5 // pred_check_branch
        %232 = sbr.rel (%p229) target = $region40
      $region39: #{tpu_custom_call.1} parent=5 // pred_region
        %s233 = ssub.s32 %s18, 1
        %s234 = sand.u32 %s31, 1
        %s235 = scalar_lea.sflag [#allocation3], %s234
        %s236 = sand.u32 %s31, 1
        %s237 = smul.addr %s236, 256
        %s238 = scalar_lea.vmem [#allocation2], %s237
        // Predicated region
        $region41: #{tpu_custom_call.1} parent=39 // pred_check
          %p239 = pneg %p44
        $region42: #{tpu_custom_call.1} parent=39 // pred_check_branch
          %241 = sbr.rel (%p239) target = $region44
        $region43: #{tpu_custom_call.1} parent=39 // pred_region
          %242 = dma.done %s235, 4096
        $region44: #{tpu_custom_call.1} parent=39 // pred_fallthru
          _
        // Predicated region
        $region45: #{tpu_custom_call.1} parent=39 // pred_check
          %p243 = pneg %p65
        $region46: #{tpu_custom_call.1} parent=39 // pred_check_branch
          %245 = sbr.rel (%p243) target = $region48
        $region47: #{tpu_custom_call.1} parent=39 // pred_region
          %246 = dma.done [#allocation6], 2048
        $region48: #{tpu_custom_call.1} parent=39 // pred_fallthru
          _
        // Predicated region
        $region49: #{tpu_custom_call.1} parent=39 // pred_check
          %p247 = pneg %p107
        $region50: #{tpu_custom_call.1} parent=39 // pred_check_branch
          %249 = sbr.rel (%p247) target = $region52
        $region51: #{tpu_custom_call.1} parent=39 // pred_region
          %250 = dma.done [#allocation6], 1024
        $region52: #{tpu_custom_call.1} parent=39 // pred_fallthru
          _
        %s251 = sand.u32 %s31, 1
        %s252 = scalar_lea.sflag [#allocation3], %s251
        %s253 = sand.u32 %s31, 1
        %s254 = smul.addr %s253, 256
        %s255 = scalar_lea.vmem [#allocation2], %s254
        %p256 = pneg %p44
        %p257 = pneg %p41
        %p258 = pneg %p65
        %p259 = pneg %p62
        %p260 = pneg %p86
        %p261 = pneg %p83
        %p262 = pneg %p107
        %p263 = pneg %p104
        %p264 = pneg %p128
        %p265 = pneg %p125
        %p266 = pneg %p154
        %p267 = pneg %p151
        %s268 = sand.u32 %s141, 1
        %s269 = scalar_lea.sflag [#allocation4], %s268
        %s270 = sand.u32 %s141, 1
        %s271 = smul.addr %s270, 128
        %s272 = scalar_lea.vmem [#allocation8], %s271
        %s273 = smul.u32 16, %s23
        %s274 = smul.u32 16, %s23
        %v276 = vld [vmem:[%s238] sm:$0xff]
        %v277 = vld [vmem:[%s238 + $0x8] sm:$0xff]
        %v278 = vld [vmem:[%s238 + $0x10] sm:$0xff]
        %v279 = vld [vmem:[%s238 + $0x18] sm:$0xff]
        %v280 = vld [vmem:[%s238 + $0x20] sm:$0xff]
        %v281 = vld [vmem:[%s238 + $0x28] sm:$0xff]
        %v282 = vld [vmem:[%s238 + $0x30] sm:$0xff]
        %v283 = vld [vmem:[%s238 + $0x38] sm:$0xff]
        %v284 = vld [vmem:[%s238 + $0x40] sm:$0xff]
        %v285 = vld [vmem:[%s238 + $0x48] sm:$0xff]
        %v286 = vld [vmem:[%s238 + $0x50] sm:$0xff]
        %v287 = vld [vmem:[%s238 + $0x58] sm:$0xff]
        %v288 = vld [vmem:[%s238 + $0x60] sm:$0xff]
        %v289 = vld [vmem:[%s238 + $0x68] sm:$0xff]
        %v290 = vld [vmem:[%s238 + $0x70] sm:$0xff]
        %v291 = vld [vmem:[%s238 + $0x78] sm:$0xff]
        %v292 = vld [vmem:[%s238 + $0x80] sm:$0xff]
        %v293 = vld [vmem:[%s238 + $0x88] sm:$0xff]
        %v294 = vld [vmem:[%s238 + $0x90] sm:$0xff]
        %v295 = vld [vmem:[%s238 + $0x98] sm:$0xff]
        %v296 = vld [vmem:[%s238 + $0xa0] sm:$0xff]
        %v297 = vld [vmem:[%s238 + $0xa8] sm:$0xff]
        %v298 = vld [vmem:[%s238 + $0xb0] sm:$0xff]
        %v299 = vld [vmem:[%s238 + $0xb8] sm:$0xff]
        %v300 = vld [vmem:[%s238 + $0xc0] sm:$0xff]
        %v301 = vld [vmem:[%s238 + $0xc8] sm:$0xff]
        %v302 = vld [vmem:[%s238 + $0xd0] sm:$0xff]
        %v303 = vld [vmem:[%s238 + $0xd8] sm:$0xff]
        %v304 = vld [vmem:[%s238 + $0xe0] sm:$0xff]
        %v305 = vld [vmem:[%s238 + $0xe8] sm:$0xff]
        %v306 = vld [vmem:[%s238 + $0xf0] sm:$0xff]
        %v307 = vld [vmem:[%s238 + $0xf8] sm:$0xff]
        %v308 = vpack.c.bf16 %v278, %v276
        %v309 = vpack.c.bf16 %v279, %v277
        %v310 = vpack.c.bf16 %v282, %v280
        %v311 = vpack.c.bf16 %v283, %v281
        %v312 = vpack.c.bf16 %v286, %v284
        %v313 = vpack.c.bf16 %v287, %v285
        %v314 = vpack.c.bf16 %v290, %v288
        %v315 = vpack.c.bf16 %v291, %v289
        %v316 = vpack.c.bf16 %v294, %v292
        %v317 = vpack.c.bf16 %v295, %v293
        %v318 = vpack.c.bf16 %v298, %v296
        %v319 = vpack.c.bf16 %v299, %v297
        %v320 = vpack.c.bf16 %v302, %v300
        %v321 = vpack.c.bf16 %v303, %v301
        %v322 = vpack.c.bf16 %v306, %v304
        %v323 = vpack.c.bf16 %v307, %v305
        %v324 = vld [vmem:[#allocation5] sm:$0xf]
        %v325 = vld [vmem:[#allocation5 + $0x4] sm:$0xf]
        %v326 = vld [vmem:[#allocation5 + $0x8] sm:$0xf]
        %v327 = vld [vmem:[#allocation5 + $0xc] sm:$0xf]
        %v328 = vld [vmem:[#allocation5 + $0x10] sm:$0xf]
        %v329 = vld [vmem:[#allocation5 + $0x14] sm:$0xf]
        %v330 = vld [vmem:[#allocation5 + $0x18] sm:$0xf]
        %v331 = vld [vmem:[#allocation5 + $0x1c] sm:$0xf]
        %v332 = vld [vmem:[#allocation5 + $0x20] sm:$0xf]
        %v333 = vld [vmem:[#allocation5 + $0x24] sm:$0xf]
        %v334 = vld [vmem:[#allocation5 + $0x28] sm:$0xf]
        %v335 = vld [vmem:[#allocation5 + $0x2c] sm:$0xf]
        %v336 = vld [vmem:[#allocation5 + $0x30] sm:$0xf]
        %v337 = vld [vmem:[#allocation5 + $0x34] sm:$0xf]
        %v338 = vld [vmem:[#allocation5 + $0x38] sm:$0xf]
        %v339 = vld [vmem:[#allocation5 + $0x3c] sm:$0xf]
        %v340 = vld [vmem:[#allocation5 + $0x40] sm:$0xf]
        %v341 = vld [vmem:[#allocation5 + $0x44] sm:$0xf]
        %v342 = vld [vmem:[#allocation5 + $0x48] sm:$0xf]
        %v343 = vld [vmem:[#allocation5 + $0x4c] sm:$0xf]
        %v344 = vld [vmem:[#allocation5 + $0x50] sm:$0xf]
        %v345 = vld [vmem:[#allocation5 + $0x54] sm:$0xf]
        %v346 = vld [vmem:[#allocation5 + $0x58] sm:$0xf]
        %v347 = vld [vmem:[#allocation5 + $0x5c] sm:$0xf]
        %v348 = vld [vmem:[#allocation5 + $0x60] sm:$0xf]
        %v349 = vld [vmem:[#allocation5 + $0x64] sm:$0xf]
        %v350 = vld [vmem:[#allocation5 + $0x68] sm:$0xf]
        %v351 = vld [vmem:[#allocation5 + $0x6c] sm:$0xf]
        %v352 = vld [vmem:[#allocation5 + $0x70] sm:$0xf]
        %v353 = vld [vmem:[#allocation5 + $0x74] sm:$0xf]
        %v354 = vld [vmem:[#allocation5 + $0x78] sm:$0xf]
        %v355 = vld [vmem:[#allocation5 + $0x7c] sm:$0xf]
        %v356 = vld [vmem:[%s2] sm:$0x1]
        %v358 = vlaneseq
        %v359 = vshrl.u32 %v358, 7
        %v360 = vsub.s32 0, %v359
        %v361 = vrot.slane %v356, %v360
        %v395 = vunpack.c.l.b16 %v324
        %v396 = vunpack.c.l.b16 %v325
        %v397 = vunpack.c.l.b16 %v326
        %v398 = vunpack.c.l.b16 %v327
        %v399 = vunpack.c.l.b16 %v328
        %v400 = vunpack.c.l.b16 %v329
        %v401 = vunpack.c.l.b16 %v330
        %v402 = vunpack.c.l.b16 %v331
        %v403 = vunpack.c.l.b16 %v332
        %v404 = vunpack.c.l.b16 %v333
        %v405 = vunpack.c.l.b16 %v334
        %v406 = vunpack.c.l.b16 %v335
        %v407 = vunpack.c.l.b16 %v336
        %v408 = vunpack.c.l.b16 %v337
        %v409 = vunpack.c.l.b16 %v338
        %v410 = vunpack.c.l.b16 %v339
        %v411 = vunpack.c.l.b16 %v340
        %v412 = vunpack.c.l.b16 %v341
        %v413 = vunpack.c.l.b16 %v342
        %v414 = vunpack.c.l.b16 %v343
        %v415 = vunpack.c.l.b16 %v344
        %v416 = vunpack.c.l.b16 %v345
        %v417 = vunpack.c.l.b16 %v346
        %v418 = vunpack.c.l.b16 %v347
        %v419 = vunpack.c.l.b16 %v348
        %v420 = vunpack.c.l.b16 %v349
        %v421 = vunpack.c.l.b16 %v350
        %v422 = vunpack.c.l.b16 %v351
        %v423 = vunpack.c.l.b16 %v352
        %v424 = vunpack.c.l.b16 %v353
        %v425 = vunpack.c.l.b16 %v354
        %v426 = vunpack.c.l.b16 %v355
        %v427 = vpack.c.b16 %v396, %v395
        %v428 = vpack.c.b16 %v398, %v397
        %v429 = vpack.c.b16 %v400, %v399
        %v430 = vpack.c.b16 %v402, %v401
        %v431 = vpack.c.b16 %v404, %v403
        %v432 = vpack.c.b16 %v406, %v405
        %v433 = vpack.c.b16 %v408, %v407
        %v434 = vpack.c.b16 %v410, %v409
        %v435 = vpack.c.b16 %v412, %v411
        %v436 = vpack.c.b16 %v414, %v413
        %v437 = vpack.c.b16 %v416, %v415
        %v438 = vpack.c.b16 %v418, %v417
        %v439 = vpack.c.b16 %v420, %v419
        %v440 = vpack.c.b16 %v422, %v421
        %v441 = vpack.c.b16 %v424, %v423
        %v442 = vpack.c.b16 %v426, %v425
        %459 = vmatprep.subr.bf16.mxu0 0
        %460 = vmatpush1.bf16.msra.mxu0 %v427
        %461 = vmatprep.subr.bf16.mxu0 0
        %462 = vmatpush1.bf16.msra.mxu0 %v428
        %463 = vmatprep.subr.bf16.mxu0 0
        %464 = vmatpush1.bf16.msra.mxu0 %v429
        %465 = vmatprep.subr.bf16.mxu0 0
        %466 = vmatpush1.bf16.msra.mxu0 %v430
        %467 = vmatprep.subr.bf16.mxu0 0
        %468 = vmatpush1.bf16.msra.mxu0 %v431
        %469 = vmatprep.subr.bf16.mxu0 0
        %470 = vmatpush1.bf16.msra.mxu0 %v432
        %471 = vmatprep.subr.bf16.mxu0 0
        %472 = vmatpush1.bf16.msra.mxu0 %v433
        %473 = vmatprep.subr.bf16.mxu0 0
        %474 = vmatpush1.bf16.msra.mxu0 %v434
        %475 = vmatprep.subr.bf16.mxu0 0
        %476 = vmatpush1.bf16.msra.mxu0 %v435
        %477 = vmatprep.subr.bf16.mxu0 0
        %478 = vmatpush1.bf16.msra.mxu0 %v436
        %479 = vmatprep.subr.bf16.mxu0 0
        %480 = vmatpush1.bf16.msra.mxu0 %v437
        %481 = vmatprep.subr.bf16.mxu0 0
        %482 = vmatpush1.bf16.msra.mxu0 %v438
        %483 = vmatprep.subr.bf16.mxu0 0
        %484 = vmatpush1.bf16.msra.mxu0 %v439
        %485 = vmatprep.subr.bf16.mxu0 0
        %486 = vmatpush1.bf16.msra.mxu0 %v440
        %487 = vmatprep.subr.bf16.mxu0 0
        %488 = vmatpush1.bf16.msra.mxu0 %v441
        %489 = vmatprep.subr.bf16.mxu0 0
        %490 = vmatpush1.bf16.msra.mxu0 %v442
        %491 = vmatprep.mubr.bf16.mxu0 %v309
        %492 = vmatmul.mubr.bf16.gmra.mrb[0].mxu0 %v308
        %v493 = vpop.f32.mrb[0].mxu0
        %v494 = vadd.f32 %v361, %v493
        %v495 = vpop.f32.mrb[0].mxu0
        %v496 = vpop.f32.mrb[0].mxu0
        %v497 = vadd.f32 %v361, %v496
        %v498 = vpop.f32.mrb[0].mxu0
        %499 = vmatprep.mubr.bf16.mxu0 %v311
        %500 = vmatmul.mubr.bf16.gmra.mrb[0].mxu0 %v310
        %v501 = vpop.f32.mrb[0].mxu0
        %v502 = vadd.f32 %v361, %v501
        %v503 = vpop.f32.mrb[0].mxu0
        %v504 = vpop.f32.mrb[0].mxu0
        %v505 = vadd.f32 %v361, %v504
        %v506 = vpop.f32.mrb[0].mxu0
        %507 = vmatprep.mubr.bf16.mxu0 %v313
        %508 = vmatmul.mubr.bf16.gmra.mrb[0].mxu0 %v312
        %v509 = vpop.f32.mrb[0].mxu0
        %v510 = vadd.f32 %v361, %v509
        %v511 = vpop.f32.mrb[0].mxu0
        %v512 = vpop.f32.mrb[0].mxu0
        %v513 = vadd.f32 %v361, %v512
        %v514 = vpop.f32.mrb[0].mxu0
        %515 = vmatprep.mubr.bf16.mxu0 %v315
        %516 = vmatmul.mubr.bf16.gmra.mrb[0].mxu0 %v314
        %v517 = vpop.f32.mrb[0].mxu0
        %v518 = vadd.f32 %v361, %v517
        %v519 = vpop.f32.mrb[0].mxu0
        %v520 = vpop.f32.mrb[0].mxu0
        %v521 = vadd.f32 %v361, %v520
        %v522 = vpop.f32.mrb[0].mxu0
        %523 = vmatprep.mubr.bf16.mxu0 %v317
        %524 = vmatmul.mubr.bf16.gmra.mrb[0].mxu0 %v316
        %v525 = vpop.f32.mrb[0].mxu0
        %v526 = vadd.f32 %v361, %v525
        %v527 = vpop.f32.mrb[0].mxu0
        %v528 = vpop.f32.mrb[0].mxu0
        %v529 = vadd.f32 %v361, %v528
        %v530 = vpop.f32.mrb[0].mxu0
        %531 = vmatprep.mubr.bf16.mxu0 %v319
        %532 = vmatmul.mubr.bf16.gmra.mrb[0].mxu0 %v318
        %v533 = vpop.f32.mrb[0].mxu0
        %v534 = vadd.f32 %v361, %v533
        %v535 = vpop.f32.mrb[0].mxu0
        %v536 = vpop.f32.mrb[0].mxu0
        %v537 = vadd.f32 %v361, %v536
        %v538 = vpop.f32.mrb[0].mxu0
        %539 = vmatprep.mubr.bf16.mxu0 %v321
        %540 = vmatmul.mubr.bf16.gmra.mrb[0].mxu0 %v320
        %v541 = vpop.f32.mrb[0].mxu0
        %v542 = vadd.f32 %v361, %v541
        %v543 = vpop.f32.mrb[0].mxu0
        %v544 = vpop.f32.mrb[0].mxu0
        %v545 = vadd.f32 %v361, %v544
        %v546 = vpop.f32.mrb[0].mxu0
        %547 = vmatprep.mubr.bf16.mxu0 %v323
        %548 = vmatmul.mubr.bf16.gmra.mrb[0].mxu0 %v322
        %v549 = vpop.f32.mrb[0].mxu0
        %v550 = vadd.f32 %v361, %v549
        %v551 = vpop.f32.mrb[0].mxu0
        %v552 = vpop.f32.mrb[0].mxu0
        %v553 = vadd.f32 %v361, %v552
        %v554 = vpop.f32.mrb[0].mxu0
        %555 = vdwg.mxu0
        %v556 = vxor.u32 %v494, 2147483648
        %v557 = vxor.u32 %v497, 2147483648
        %v558 = vxor.u32 %v502, 2147483648
        %v559 = vxor.u32 %v505, 2147483648
        %v560 = vxor.u32 %v510, 2147483648
        %v561 = vxor.u32 %v513, 2147483648
        %v562 = vxor.u32 %v518, 2147483648
        %v563 = vxor.u32 %v521, 2147483648
        %v564 = vxor.u32 %v526, 2147483648
        %v565 = vxor.u32 %v529, 2147483648
        %v566 = vxor.u32 %v534, 2147483648
        %v567 = vxor.u32 %v537, 2147483648
        %v568 = vxor.u32 %v542, 2147483648
        %v569 = vxor.u32 %v545, 2147483648
        %v570 = vxor.u32 %v550, 2147483648
        %v571 = vxor.u32 %v553, 2147483648
        %v572 = vmul.f32 %v556, 1.442695
        %v573 = vpow.pop %v572
        %v574 = vmul.f32 %v557, 1.442695
        %v575 = vpow.pop %v574
        %v576 = vmul.f32 %v558, 1.442695
        %v577 = vpow.pop %v576
        %v578 = vmul.f32 %v559, 1.442695
        %v579 = vpow.pop %v578
        %v580 = vmul.f32 %v560, 1.442695
        %v581 = vpow.pop %v580
        %v582 = vmul.f32 %v561, 1.442695
        %v583 = vpow.pop %v582
        %v584 = vmul.f32 %v562, 1.442695
        %v585 = vpow.pop %v584
        %v586 = vmul.f32 %v563, 1.442695
        %v587 = vpow.pop %v586
        %v588 = vmul.f32 %v564, 1.442695
        %v589 = vpow.pop %v588
        %v590 = vmul.f32 %v565, 1.442695
        %v591 = vpow.pop %v590
        %v592 = vmul.f32 %v566, 1.442695
        %v593 = vpow.pop %v592
        %v594 = vmul.f32 %v567, 1.442695
        %v595 = vpow.pop %v594
        %v596 = vmul.f32 %v568, 1.442695
        %v597 = vpow.pop %v596
        %v598 = vmul.f32 %v569, 1.442695
        %v599 = vpow.pop %v598
        %v600 = vmul.f32 %v570, 1.442695
        %v601 = vpow.pop %v600
        %v602 = vmul.f32 %v571, 1.442695
        %v603 = vpow.pop %v602
        %v604 = vadd.f32 %v573, 1.0
        %v605 = vadd.f32 %v575, 1.0
        %v606 = vadd.f32 %v577, 1.0
        %v607 = vadd.f32 %v579, 1.0
        %v608 = vadd.f32 %v581, 1.0
        %v609 = vadd.f32 %v583, 1.0
        %v610 = vadd.f32 %v585, 1.0
        %v611 = vadd.f32 %v587, 1.0
        %v612 = vadd.f32 %v589, 1.0
        %v613 = vadd.f32 %v591, 1.0
        %v614 = vadd.f32 %v593, 1.0
        %v615 = vadd.f32 %v595, 1.0
        %v616 = vadd.f32 %v597, 1.0
        %v617 = vadd.f32 %v599, 1.0
        %v618 = vadd.f32 %v601, 1.0
        %v619 = vadd.f32 %v603, 1.0
        %v620 = vrcp.pop %v604
        %v621 = vmul.f32 1.0, %v620
        %v622 = vrcp.pop %v605
        %v623 = vmul.f32 1.0, %v622
        %v624 = vrcp.pop %v606
        %v625 = vmul.f32 1.0, %v624
        %v626 = vrcp.pop %v607
        %v627 = vmul.f32 1.0, %v626
        %v628 = vrcp.pop %v608
        %v629 = vmul.f32 1.0, %v628
        %v630 = vrcp.pop %v609
        %v631 = vmul.f32 1.0, %v630
        %v632 = vrcp.pop %v610
        %v633 = vmul.f32 1.0, %v632
        %v634 = vrcp.pop %v611
        %v635 = vmul.f32 1.0, %v634
        %v636 = vrcp.pop %v612
        %v637 = vmul.f32 1.0, %v636
        %v638 = vrcp.pop %v613
        %v639 = vmul.f32 1.0, %v638
        %v640 = vrcp.pop %v614
        %v641 = vmul.f32 1.0, %v640
        %v642 = vrcp.pop %v615
        %v643 = vmul.f32 1.0, %v642
        %v644 = vrcp.pop %v616
        %v645 = vmul.f32 1.0, %v644
        %v646 = vrcp.pop %v617
        %v647 = vmul.f32 1.0, %v646
        %v648 = vrcp.pop %v618
        %v649 = vmul.f32 1.0, %v648
        %v650 = vrcp.pop %v619
        %v651 = vmul.f32 1.0, %v650
        %v652 = vpack.c.bf16 %v623, %v621
        %v653 = vpack.c.bf16 %v627, %v625
        %v654 = vpack.c.bf16 %v631, %v629
        %v655 = vpack.c.bf16 %v635, %v633
        %v656 = vpack.c.bf16 %v639, %v637
        %v657 = vpack.c.bf16 %v643, %v641
        %v658 = vpack.c.bf16 %v647, %v645
        %v659 = vpack.c.bf16 %v651, %v649
        %v660 = vld [vmem:[#allocation7] sm:$0xf]
        %v661 = vld [vmem:[#allocation7 + $0x4] sm:$0xf]
        %v662 = vld [vmem:[#allocation7 + $0x8] sm:$0xf]
        %v663 = vld [vmem:[#allocation7 + $0xc] sm:$0xf]
        %v664 = vld [vmem:[#allocation7 + $0x10] sm:$0xf]
        %v665 = vld [vmem:[#allocation7 + $0x14] sm:$0xf]
        %v666 = vld [vmem:[#allocation7 + $0x18] sm:$0xf]
        %v667 = vld [vmem:[#allocation7 + $0x1c] sm:$0xf]
        %v668 = vld [vmem:[#allocation7 + $0x20] sm:$0xf]
        %v669 = vld [vmem:[#allocation7 + $0x24] sm:$0xf]
        %v670 = vld [vmem:[#allocation7 + $0x28] sm:$0xf]
        %v671 = vld [vmem:[#allocation7 + $0x2c] sm:$0xf]
        %v672 = vld [vmem:[#allocation7 + $0x30] sm:$0xf]
        %v673 = vld [vmem:[#allocation7 + $0x34] sm:$0xf]
        %v674 = vld [vmem:[#allocation7 + $0x38] sm:$0xf]
        %v675 = vld [vmem:[#allocation7 + $0x3c] sm:$0xf]
        %v676 = vld [vmem:[%s4] sm:$0x1]
        %v678 = vlaneseq
        %v679 = vshrl.u32 %v678, 7
        %v680 = vsub.s32 0, %v679
        %v681 = vrot.slane %v676, %v680
        %v699 = vunpack.c.l.b16 %v660
        %v700 = vunpack.c.l.b16 %v661
        %v701 = vunpack.c.l.b16 %v662
        %v702 = vunpack.c.l.b16 %v663
        %v703 = vunpack.c.l.b16 %v664
        %v704 = vunpack.c.l.b16 %v665
        %v705 = vunpack.c.l.b16 %v666
        %v706 = vunpack.c.l.b16 %v667
        %v707 = vunpack.c.l.b16 %v668
        %v708 = vunpack.c.l.b16 %v669
        %v709 = vunpack.c.l.b16 %v670
        %v710 = vunpack.c.l.b16 %v671
        %v711 = vunpack.c.l.b16 %v672
        %v712 = vunpack.c.l.b16 %v673
        %v713 = vunpack.c.l.b16 %v674
        %v714 = vunpack.c.l.b16 %v675
        %v715 = vpack.c.b16 %v700, %v699
        %v716 = vpack.c.b16 %v702, %v701
        %v717 = vpack.c.b16 %v704, %v703
        %v718 = vpack.c.b16 %v706, %v705
        %v719 = vpack.c.b16 %v708, %v707
        %v720 = vpack.c.b16 %v710, %v709
        %v721 = vpack.c.b16 %v712, %v711
        %v722 = vpack.c.b16 %v714, %v713
        %731 = vmatprep.subr.bf16.mxu0 0
        %732 = vmatpush1.bf16.msra.mxu0 %v715
        %733 = vmatprep.subr.bf16.mxu0 0
        %734 = vmatpush1.bf16.msra.mxu0 %v716
        %735 = vmatprep.subr.bf16.mxu0 0
        %736 = vmatpush1.bf16.msra.mxu0 %v717
        %737 = vmatprep.subr.bf16.mxu0 0
        %738 = vmatpush1.bf16.msra.mxu0 %v718
        %739 = vmatprep.subr.bf16.mxu0 0
        %740 = vmatpush1.bf16.msra.mxu0 %v719
        %741 = vmatprep.subr.bf16.mxu0 0
        %742 = vmatpush1.bf16.msra.mxu0 %v720
        %743 = vmatprep.subr.bf16.mxu0 0
        %744 = vmatpush1.bf16.msra.mxu0 %v721
        %745 = vmatprep.subr.bf16.mxu0 0
        %746 = vmatpush1.bf16.msra.mxu0 %v722
        %747 = vmatprep.subr.bf16.mxu0 0
        %748 = vmatpush1.bf16.msra.mxu0 0
        %749 = vmatprep.subr.bf16.mxu0 0
        %750 = vmatpush1.bf16.msra.mxu0 0
        %751 = vmatprep.subr.bf16.mxu0 0
        %752 = vmatpush1.bf16.msra.mxu0 0
        %753 = vmatprep.subr.bf16.mxu0 0
        %754 = vmatpush1.bf16.msra.mxu0 0
        %755 = vmatprep.subr.bf16.mxu0 0
        %756 = vmatpush1.bf16.msra.mxu0 0
        %757 = vmatprep.subr.bf16.mxu0 0
        %758 = vmatpush1.bf16.msra.mxu0 0
        %759 = vmatprep.subr.bf16.mxu0 0
        %760 = vmatpush1.bf16.msra.mxu0 0
        %761 = vmatprep.subr.bf16.mxu0 0
        %762 = vmatpush1.bf16.msra.mxu0 0
        %763 = vmatprep.mubr.bf16.mxu0 0
        %764 = vmatmul.mubr.bf16.gmra.mrb[0].mxu0 %v652
        %v765 = vpop.f32.mrb[0].mxu0
        %v766 = vadd.f32 %v681, %v765
        %v767 = vpop.f32.mrb[0].mxu0
        %v768 = vpop.f32.mrb[0].mxu0
        %v769 = vadd.f32 %v681, %v768
        %v770 = vpop.f32.mrb[0].mxu0
        %771 = vmatprep.mubr.bf16.mxu0 0
        %772 = vmatmul.mubr.bf16.gmra.mrb[0].mxu0 %v653
        %v773 = vpop.f32.mrb[0].mxu0
        %v774 = vadd.f32 %v681, %v773
        %v775 = vpop.f32.mrb[0].mxu0
        %v776 = vpop.f32.mrb[0].mxu0
        %v777 = vadd.f32 %v681, %v776
        %v778 = vpop.f32.mrb[0].mxu0
        %779 = vmatprep.mubr.bf16.mxu0 0
        %780 = vmatmul.mubr.bf16.gmra.mrb[0].mxu0 %v654
        %v781 = vpop.f32.mrb[0].mxu0
        %v782 = vadd.f32 %v681, %v781
        %v783 = vpop.f32.mrb[0].mxu0
        %v784 = vpop.f32.mrb[0].mxu0
        %v785 = vadd.f32 %v681, %v784
        %v786 = vpop.f32.mrb[0].mxu0
        %787 = vmatprep.mubr.bf16.mxu0 0
        %788 = vmatmul.mubr.bf16.gmra.mrb[0].mxu0 %v655
        %v789 = vpop.f32.mrb[0].mxu0
        %v790 = vadd.f32 %v681, %v789
        %v791 = vpop.f32.mrb[0].mxu0
        %v792 = vpop.f32.mrb[0].mxu0
        %v793 = vadd.f32 %v681, %v792
        %v794 = vpop.f32.mrb[0].mxu0
        %795 = vmatprep.mubr.bf16.mxu0 0
        %796 = vmatmul.mubr.bf16.gmra.mrb[0].mxu0 %v656
        %v797 = vpop.f32.mrb[0].mxu0
        %v798 = vadd.f32 %v681, %v797
        %v799 = vpop.f32.mrb[0].mxu0
        %v800 = vpop.f32.mrb[0].mxu0
        %v801 = vadd.f32 %v681, %v800
        %v802 = vpop.f32.mrb[0].mxu0
        %803 = vmatprep.mubr.bf16.mxu0 0
        %804 = vmatmul.mubr.bf16.gmra.mrb[0].mxu0 %v657
        %v805 = vpop.f32.mrb[0].mxu0
        %v806 = vadd.f32 %v681, %v805
        %v807 = vpop.f32.mrb[0].mxu0
        %v808 = vpop.f32.mrb[0].mxu0
        %v809 = vadd.f32 %v681, %v808
        %v810 = vpop.f32.mrb[0].mxu0
        %811 = vmatprep.mubr.bf16.mxu0 0
        %812 = vmatmul.mubr.bf16.gmra.mrb[0].mxu0 %v658
        %v813 = vpop.f32.mrb[0].mxu0
        %v814 = vadd.f32 %v681, %v813
        %v815 = vpop.f32.mrb[0].mxu0
        %v816 = vpop.f32.mrb[0].mxu0
        %v817 = vadd.f32 %v681, %v816
        %v818 = vpop.f32.mrb[0].mxu0
        %819 = vmatprep.mubr.bf16.mxu0 0
        %820 = vmatmul.mubr.bf16.gmra.mrb[0].mxu0 %v659
        %v821 = vpop.f32.mrb[0].mxu0
        %v822 = vadd.f32 %v681, %v821
        %v823 = vpop.f32.mrb[0].mxu0
        %v824 = vpop.f32.mrb[0].mxu0
        %v825 = vadd.f32 %v681, %v824
        %v826 = vpop.f32.mrb[0].mxu0
        %827 = vdwg.mxu0
        %828 = vst [vmem:[%s272] sm:$0xff] %v766
        %829 = vst [vmem:[%s272 + $0x8] sm:$0xff] %v769
        %830 = vst [vmem:[%s272 + $0x10] sm:$0xff] %v774
        %831 = vst [vmem:[%s272 + $0x18] sm:$0xff] %v777
        %832 = vst [vmem:[%s272 + $0x20] sm:$0xff] %v782
        %833 = vst [vmem:[%s272 + $0x28] sm:$0xff] %v785
        %834 = vst [vmem:[%s272 + $0x30] sm:$0xff] %v790
        %835 = vst [vmem:[%s272 + $0x38] sm:$0xff] %v793
        %836 = vst [vmem:[%s272 + $0x40] sm:$0xff] %v798
        %837 = vst [vmem:[%s272 + $0x48] sm:$0xff] %v801
        %838 = vst [vmem:[%s272 + $0x50] sm:$0xff] %v806
        %839 = vst [vmem:[%s272 + $0x58] sm:$0xff] %v809
        %840 = vst [vmem:[%s272 + $0x60] sm:$0xff] %v814
        %841 = vst [vmem:[%s272 + $0x68] sm:$0xff] %v817
        %842 = vst [vmem:[%s272 + $0x70] sm:$0xff] %v822
        %843 = vst [vmem:[%s272 + $0x78] sm:$0xff] %v825
        %s844 = sand.u32 %s141, 1
        %s845 = scalar_lea.sflag [#allocation4], %s844
        %s846 = sand.u32 %s141, 1
        %s847 = smul.addr %s846, 128
        %s848 = scalar_lea.vmem [#allocation8], %s847
        // Predicated region
        $region53: #{tpu_custom_call.1} parent=39 // pred_check
          %p849 = pneg %p151
        $region54: #{tpu_custom_call.1} parent=39 // pred_check_branch
          %851 = sbr.rel (%p849) target = $region56
        $region55: #{tpu_custom_call.1} parent=39 // pred_region
          %s852 = smul.u32 16, %s23
          %s854 = ssub.s32 2048, 2048
          %855 = vsyncadd %s845, %s854
          %s856 = smul.addr %s852, 128
          %s857 = scalar_lea.hbm %s5, %s856
          %s858 = sshll.u32 %s848, 4
          %s859 = int_to_ptr.vmem [resolvable:$true] %s858
          %864 = dma.vmem_to_hbm [thread:$0]  %s859, 2048, %s857, %s845, 128, 128, 8
        $region56: #{tpu_custom_call.1} parent=39 // pred_fallthru
          _
      $region40: #{tpu_custom_call.1} parent=5 // pred_fallthru
        _
      %p865 = scmp.le.s32.totalorder 2, %s18
      // Predicated region
      $region57: #{tpu_custom_call.1} parent=5 // pred_check
        %p866 = pneg %p865
      $region58: #{tpu_custom_call.1} parent=5 // pred_check_branch
        %868 = sbr.rel (%p866) target = $region60
      $region59: #{tpu_custom_call.1} parent=5 // pred_region
        %s869 = ssub.s32 %s18, 2
        // Predicated region
        $region61: #{tpu_custom_call.1} parent=59 // pred_check
          %p870 = pneg %p157
        $region62: #{tpu_custom_call.1} parent=59 // pred_check_branch
          %872 = sbr.rel (%p870) target = $region64
        $region63: #{tpu_custom_call.1} parent=59 // pred_region
          %s873 = sand.u32 %s142, 1
          %s874 = scalar_lea.sflag [#allocation4], %s873
          %s875 = sand.u32 %s142, 1
          %s876 = smul.addr %s875, 128
          %s877 = scalar_lea.vmem [#allocation8], %s876
          %878 = dma.done %s874, 2048
        $region64: #{tpu_custom_call.1} parent=59 // pred_fallthru
          _
      $region60: #{tpu_custom_call.1} parent=5 // pred_fallthru
        _
    $region6: #{tpu_custom_call.1} parent=1 // loop_footer
      %s22 = sadd.s32 1, %s18
    $region7: #{tpu_custom_call.1} parent=1 // loop_footer_branch
      %17 = sbr.rel target = $region3
    $region8: #{tpu_custom_call.1} parent=1 // loop_exit
      _
    %879 = vsyncpa [#allocation3], 1
    %s880 = scalar_lea.sflag [#allocation3], 1
    %881 = vsyncpa %s880, 1
    %882 = vsyncpa [#allocation6], 1
    %883 = vsyncpa [#allocation4], 1
    %s884 = scalar_lea.sflag [#allocation4], 1
    %885 = vsyncpa %s884, 1

</llo_original>
